<compile_context>
chip_gen: v7x
topology: tpu7x:2x2x1
jax: 0.10.0
libtpu: 0.0.40
codegen_flags: <defaults>
</compile_context>

<pallas_src>
import functools

import jax
import jax.numpy as jnp
from jax.experimental import pallas as pl
from jax.experimental.pallas import tpu as pltpu


def _mlp_row(avg_col, max_col, w1, w2t):
    """sigmoid(W2 @ (relu(W1 @ avg) + relu(W1 @ max))) as a lane-dense (1, C) row.

    avg_col / max_col: (C, 1) f32 columns.  w1: (Cr, C).  w2t: (Cr, C) == W2^T.
    The second 1x1 conv is linear, so the two branches share the final dot.
    """
    h = (jnp.maximum(jnp.dot(w1, avg_col, preferred_element_type=jnp.float32), 0.0)
         + jnp.maximum(jnp.dot(w1, max_col, preferred_element_type=jnp.float32), 0.0))  # (Cr, 1)
    # Contract over Cr (dim 0 of both operands) -> (1, C): the result lands with
    # C on the 128-lane axis, so the store below is an unmasked dense row store.
    row = jax.lax.dot_general(h, w2t, (((0,), (0,)), ((), ())),
                              preferred_element_type=jnp.float32)                        # (1, C)
    return jax.nn.sigmoid(row)


def _ca_batched_kernel(x_ref, w1_ref, w2t_ref, o_ref, *, hw, bt):
    """Small-HW regime: one grid step = Bt whole images.

    Blocks: x = (Bt, C, HW), w1/w2t = (Cr, C), out = (Bt, 1, C).
    """
    x = x_ref[...].astype(jnp.float32)                      # (Bt, C, HW)
    s = jnp.sum(x, axis=-1, keepdims=True)                  # (Bt, C, 1)
    m = jnp.max(x, axis=-1, keepdims=True)                  # (Bt, C, 1)
    w1 = w1_ref[...]
    w2t = w2t_ref[...]
    inv_hw = 1.0 / float(hw)
    # The MLP is tiny and runs once per image; a static loop over Bt (<= 16) is
    # hidden under the next block's DMA.
    for i in range(bt):
        row = _mlp_row(s[i] * inv_hw, m[i], w1, w2t)        # (1, C)
        o_ref[i] = row.astype(o_ref.dtype)


def _ca_tiled_kernel(x_ref, w1_ref, w2t_ref, o_ref, sum_acc, max_acc,
                     *, hw, thw, c):
    """Large-HW regime: grid = (B, nt); HW streamed in thw-wide tiles per image.

    Blocks: x = (1, C, thw), out = (1, 1, C); scratch: (C, 1) running sum / max.
    """
    t = pl.program_id(1)
    nt = pl.cdiv(hw, thw)                     # static
    last_valid = hw - (nt - 1) * thw          # static: valid lanes in last tile

    @pl.when(t == 0)
    def _init():
        sum_acc[...] = jnp.zeros_like(sum_acc)
        max_acc[...] = jnp.full_like(max_acc, -jnp.inf)

    # Single-pass chunked accumulation (feeds both reductions from one chunk
    # load) when the register budget allows; plain 2-pass reduce otherwise.
    use_chunked = (c <= 128) and (thw % 128 == 0) and (thw // 128 >= 2)

    def accum_full():
        if use_chunked:
            n_chunks = thw // 128

            def body(i, carry):
                s_w, m_w = carry
                off = pl.multiple_of(i * 128, 128)
                chunk = x_ref[0, :, pl.ds(off, 128)].astype(jnp.float32)   # (C, 128)
                return s_w + chunk, jnp.maximum(m_w, chunk)

            s_w, m_w = jax.lax.fori_loop(
                0, n_chunks, body,
                (jnp.zeros((c, 128), jnp.float32),
                 jnp.full((c, 128), -jnp.inf, jnp.float32)),
                unroll=n_chunks <= 8)
            sum_acc[...] += jnp.sum(s_w, axis=-1, keepdims=True)
            max_acc[...] = jnp.maximum(max_acc[...],
                                       jnp.max(m_w, axis=-1, keepdims=True))
        else:
            x = x_ref[0].astype(jnp.float32)                # (C, thw)
            sum_acc[...] += jnp.sum(x, axis=-1, keepdims=True)
            max_acc[...] = jnp.maximum(max_acc[...],
                                       jnp.max(x, axis=-1, keepdims=True))

    def accum_tail():
        # Runs on exactly one tile per image; keeps every other tile unmasked.
        x = x_ref[0].astype(jnp.float32)                    # (C, thw)
        lane = jax.lax.broadcasted_iota(jnp.int32, (1, thw), 1)
        valid = lane < last_valid                           # broadcasts over C
        sum_acc[...] += jnp.sum(jnp.where(valid, x, 0.0), axis=-1, keepdims=True)
        max_acc[...] = jnp.maximum(
            max_acc[...],
            jnp.max(jnp.where(valid, x, -jnp.inf), axis=-1, keepdims=True))

    if hw % thw == 0:
        accum_full()
    else:
        pl.when(t < nt - 1)(accum_full)
        pl.when(t == nt - 1)(accum_tail)

    @pl.when(t == nt - 1)
    def _finalize():
        row = _mlp_row(sum_acc[...] * (1.0 / float(hw)), max_acc[...],
                       w1_ref[...], w2t_ref[...])           # (1, C)
        o_ref[0] = row.astype(o_ref.dtype)


def channel_attention(x_nchw, w1, w2, *,
                      target_tile_bytes=2 * 1024 * 1024,
                      max_batch_block=16):
    """Pallas forward of ChannelAttention.

    x_nchw: (B, C, H, W) f32/bf16.  w1: (C//r, C).  w2: (C, C//r).
    Returns (B, C, 1, 1) in x's dtype, matching the PyTorch module.
    """
    B, C, H, W = x_nchw.shape
    Cr, C_in = w1.shape
    assert C_in == C and w2.shape == (C, Cr)
    HW = H * W

    x = x_nchw.reshape(B, C, HW)              # native layout; free reshape
    w2t = jnp.transpose(w2)                   # (Cr, C): tiny, enables lane-dense out
    itemsize = jnp.dtype(x.dtype).itemsize
    row_bytes = C * HW * itemsize
    w_bytes = (w1.size * jnp.dtype(w1.dtype).itemsize
               + w2t.size * jnp.dtype(w2t.dtype).itemsize)

    # Spatial tile candidate: ~target_tile_bytes worth of lanes, multiple of 128.
    thw = max(128, (target_tile_bytes // max(1, C * itemsize)) // 128 * 128)

    # TODO(synk): for B == 1 on v7x, add a second parallel axis (split C or the
    # spatial reduction across the two TensorCores) so both cores have work.

    def _params(block_bytes, dims):
        kwargs = dict(dimension_semantics=dims)
        need = 2 * block_bytes + 2 * w_bytes + (64 << 10)
        if need > 12 * 1024 * 1024:           # only triggers for huge-C edge cases
            kwargs["vmem_limit_bytes"] = int(min(need + (8 << 20), 64 << 20))
        return pltpu.CompilerParams(**kwargs)

    if thw >= HW:
        # ---- small-HW regime: whole rows per step; block the batch axis -----
        bt_cap = max(1, min(max_batch_block, B,
                            target_tile_bytes // max(1, row_bytes)))
        bt = 1
        for d in range(1, int(bt_cap) + 1):   # largest divisor of B <= cap
            if B % d == 0:
                bt = d
        kernel = functools.partial(_ca_batched_kernel, hw=HW, bt=bt)
        out = pl.pallas_call(
            kernel,
            out_shape=jax.ShapeDtypeStruct((B, 1, C), x.dtype),
            grid_spec=pltpu.PrefetchScalarGridSpec(
                num_scalar_prefetch=0,
                grid=(B // bt,),
                in_specs=[
                    pl.BlockSpec((bt, C, HW), lambda b: (b, 0, 0)),
                    pl.BlockSpec((Cr, C), lambda b: (0, 0)),
                    pl.BlockSpec((Cr, C), lambda b: (0, 0)),
                ],
                out_specs=pl.BlockSpec((bt, 1, C), lambda b: (b, 0, 0)),
            ),
            compiler_params=_params(bt * row_bytes, ("parallel",)),
        )(x, w1, w2t)
    else:
        # ---- large-HW regime: stream HW in thw-wide tiles per image ---------
        nt = pl.cdiv(HW, thw)
        kernel = functools.partial(_ca_tiled_kernel, hw=HW, thw=thw, c=C)
        out = pl.pallas_call(
            kernel,
            out_shape=jax.ShapeDtypeStruct((B, 1, C), x.dtype),
            grid_spec=pltpu.PrefetchScalarGridSpec(
                num_scalar_prefetch=0,
                grid=(B, nt),
                in_specs=[
                    pl.BlockSpec((1, C, thw), lambda b, t: (b, 0, t)),
                    pl.BlockSpec((Cr, C), lambda b, t: (0, 0)),
                    pl.BlockSpec((Cr, C), lambda b, t: (0, 0)),
                ],
                out_specs=pl.BlockSpec((1, 1, C), lambda b, t: (b, 0, 0)),
                scratch_shapes=[
                    pltpu.VMEM((C, 1), jnp.float32),   # running sum
                    pltpu.VMEM((C, 1), jnp.float32),   # running max
                ],
            ),
            compiler_params=_params(C * thw * itemsize, ("parallel", "arbitrary")),
        )(x, w1, w2t)

    return out.reshape(B, C, 1, 1)


def _reference(x_nchw, w1, w2):
    # Pure-JAX reference of the PyTorch forward (f32 math).
    xf = x_nchw.astype(jnp.float32)
    avg = jnp.mean(xf, axis=(2, 3))                        # (B, C)
    mx = jnp.max(xf, axis=(2, 3))                          # (B, C)

    def fc(v):
        return jnp.maximum(v @ w1.T, 0.0) @ w2.T           # (B, C)

    return jax.nn.sigmoid(fc(avg) + fc(mx))[:, :, None, None]


if __name__ == "__main__":
    # Module config: in_channels=128, reduction=16 -> hidden = 8.
    B, C, reduction = 2, 128, 16
    Cr = C // reduction

    key = jax.random.PRNGKey(0)
    k1, k2, kx1, kx2 = jax.random.split(key, 4)

    # Conv2d(C, Cr, 1, bias=False).weight -> (Cr, C); Conv2d(Cr, C, 1, bias=False) -> (C, Cr)
    w1 = jax.random.normal(k1, (Cr, C), dtype=jnp.float32) * 0.1
    w2 = jax.random.normal(k2, (C, Cr), dtype=jnp.float32) * 0.1

    # Case 1: small feature map -> batch-blocked whole-row path (Bt = 2).
    x1 = jax.random.normal(kx1, (B, C, 16, 16), dtype=jnp.float32)
    o1 = jax.block_until_ready(channel_attention(x1, w1, w2))
    r1 = _reference(x1, w1, w2)
    assert o1.shape == (B, C, 1, 1)
    if not jnp.allclose(o1.astype(jnp.float32), r1, atol=3e-5, rtol=3e-5):
        raise AssertionError("mismatch vs reference (case 1: batched whole-row path)")

    # Case 2: force spatial tiling -> chunked single-pass reduce + masked tail.
    x2 = jax.random.normal(kx2, (B, C, 34, 34), dtype=jnp.float32)
    o2 = jax.block_until_ready(
        channel_attention(x2, w1, w2, target_tile_bytes=128 * 1024))
    r2 = _reference(x2, w1, w2)
    if not jnp.allclose(o2.astype(jnp.float32), r2, atol=3e-5, rtol=3e-5):
        raise AssertionError("mismatch vs reference (case 2: tiled f32 path)")

    # Case 3: bf16 input through the tiled path (output dtype follows input).
    x3 = x2.astype(jnp.bfloat16)
    o3 = jax.block_until_ready(
        channel_attention(x3, w1, w2, target_tile_bytes=128 * 1024))
    r3 = _reference(x3, w1, w2)
    assert o3.dtype == jnp.bfloat16
    if not jnp.allclose(o3.astype(jnp.float32), r3, atol=2e-2, rtol=2e-2):
        raise AssertionError("mismatch vs reference (case 3: tiled bf16 path)")

    print("KERNEL_OK")
</pallas_src>

<mosaic_0001>
module attributes {stable_mosaic.version = 11 : i64} {
  func.func @_ca_batched_kernel(%arg0: i32, %arg1: memref<2x128x256xf32, #tpu.memory_space<vmem>>, %arg2: memref<8x128xf32, #tpu.memory_space<vmem>>, %arg3: memref<8x128xf32, #tpu.memory_space<vmem>>, %arg4: memref<2x1x128xf32, #tpu.memory_space<vmem>>) attributes {dimension_semantics = [#tpu.dimension_semantics<parallel>], iteration_bounds = array<i64: 1>, scalar_prefetch = 0 : i64, scratch_operands = 0 : i64, tpu.core_type = #tpu.core_type<tc>, window_params = [{transform_indices = @transform_0, window_bounds = array<i64: 2, 128, 256>}, {pipeline_mode = #tpu.pipeline_mode<synchronous>, transform_indices = @transform_1, window_bounds = array<i64: 8, 128>}, {pipeline_mode = #tpu.pipeline_mode<synchronous>, transform_indices = @transform_2, window_bounds = array<i64: 8, 128>}, {transform_indices = @transform_3, window_bounds = array<i64: 2, 1, 128>}]} {
    %c0 = arith.constant 0 : index
    %c0_0 = arith.constant 0 : index
    %c0_1 = arith.constant 0 : index
    %0 = vector.load %arg1[%c0, %c0_0, %c0_1] : memref<2x128x256xf32, #tpu.memory_space<vmem>>, vector<2x128x256xf32>
    %cst = arith.constant dense<0.000000e+00> : vector<2x128xf32>
    %1 = vector.multi_reduction <add>, %0, %cst [2] : vector<2x128x256xf32> to vector<2x128xf32>
    %2 = vector.shape_cast %1 : vector<2x128xf32> to vector<2x128x1xf32>
    %cst_2 = arith.constant dense<0xFF800000> : vector<2x128xf32>
    %3 = vector.multi_reduction <maximumf>, %0, %cst_2 [2] : vector<2x128x256xf32> to vector<2x128xf32>
    %4 = vector.shape_cast %3 : vector<2x128xf32> to vector<2x128x1xf32>
    %c0_3 = arith.constant 0 : index
    %c0_4 = arith.constant 0 : index
    %5 = vector.load %arg2[%c0_3, %c0_4] : memref<8x128xf32, #tpu.memory_space<vmem>>, vector<8x128xf32>
    %c0_5 = arith.constant 0 : index
    %c0_6 = arith.constant 0 : index
    %6 = vector.load %arg3[%c0_5, %c0_6] : memref<8x128xf32, #tpu.memory_space<vmem>>, vector<8x128xf32>
    %7 = vector.extract_strided_slice %2 {offsets = [0, 0, 0], sizes = [1, 128, 1], strides = [1, 1, 1]} : vector<2x128x1xf32> to vector<1x128x1xf32>
    %8 = vector.shape_cast %7 : vector<1x128x1xf32> to vector<128x1xf32>
    %cst_7 = arith.constant 3.906250e-03 : f32
    %9 = vector.broadcast %cst_7 : f32 to vector<128x1xf32>
    %10 = arith.mulf %8, %9 : vector<128x1xf32>
    %11 = vector.extract_strided_slice %4 {offsets = [0, 0, 0], sizes = [1, 128, 1], strides = [1, 1, 1]} : vector<2x128x1xf32> to vector<1x128x1xf32>
    %12 = vector.shape_cast %11 : vector<1x128x1xf32> to vector<128x1xf32>
    %cst_8 = arith.constant dense<0.000000e+00> : vector<8x1xf32>
    %13 = tpu.matmul %5, %10, %cst_8 {dimension_numbers = #tpu.dot_dimension_numbers<[1], [0], [0], [1], [0, 0, 1, 1], [], []>} : vector<8x128xf32>, vector<128x1xf32>, vector<8x1xf32> -> vector<8x1xf32>
    %cst_9 = arith.constant 0.000000e+00 : f32
    %14 = vector.broadcast %cst_9 : f32 to vector<8x1xf32>
    %15 = arith.maximumf %13, %14 : vector<8x1xf32>
    %cst_10 = arith.constant dense<0.000000e+00> : vector<8x1xf32>
    %16 = tpu.matmul %5, %12, %cst_10 {dimension_numbers = #tpu.dot_dimension_numbers<[1], [0], [0], [1], [0, 0, 1, 1], [], []>} : vector<8x128xf32>, vector<128x1xf32>, vector<8x1xf32> -> vector<8x1xf32>
    %cst_11 = arith.constant 0.000000e+00 : f32
    %17 = vector.broadcast %cst_11 : f32 to vector<8x1xf32>
    %18 = arith.maximumf %16, %17 : vector<8x1xf32>
    %19 = arith.addf %15, %18 : vector<8x1xf32>
    %cst_12 = arith.constant dense<0.000000e+00> : vector<1x128xf32>
    %20 = tpu.matmul %19, %6, %cst_12 {dimension_numbers = #tpu.dot_dimension_numbers<[0], [0], [1], [1], [0, 1, 1, 1], [], []>} : vector<8x1xf32>, vector<8x128xf32>, vector<1x128xf32> -> vector<1x128xf32>
    %21 = arith.negf %20 : vector<1x128xf32>
    %22 = math.exp %21 : vector<1x128xf32>
    %cst_13 = arith.constant 1.000000e+00 : f32
    %23 = vector.broadcast %cst_13 : f32 to vector<1x128xf32>
    %24 = arith.addf %23, %22 : vector<1x128xf32>
    %25 = arith.divf %23, %24 : vector<1x128xf32>
    %c0_14 = arith.constant 0 : index
    %c0_15 = arith.constant 0 : index
    %c0_16 = arith.constant 0 : index
    %26 = vector.load %arg4[%c0_14, %c0_15, %c0_16] : memref<2x1x128xf32, #tpu.memory_space<vmem>>, vector<1x1x128xf32>
    %27 = vector.shape_cast %26 : vector<1x1x128xf32> to vector<1x128xf32>
    %28 = vector.shape_cast %25 : vector<1x128xf32> to vector<1x1x128xf32>
    tpu.vector_store %arg4[%c0_14, %c0_15, %c0_16], %28 {strides = array<i32>} : memref<2x1x128xf32, #tpu.memory_space<vmem>>, vector<1x1x128xf32>,
    %29 = vector.extract_strided_slice %2 {offsets = [1, 0, 0], sizes = [1, 128, 1], strides = [1, 1, 1]} : vector<2x128x1xf32> to vector<1x128x1xf32>
    %30 = vector.shape_cast %29 : vector<1x128x1xf32> to vector<128x1xf32>
    %cst_17 = arith.constant 3.906250e-03 : f32
    %31 = vector.broadcast %cst_17 : f32 to vector<128x1xf32>
    %32 = arith.mulf %30, %31 : vector<128x1xf32>
    %33 = vector.extract_strided_slice %4 {offsets = [1, 0, 0], sizes = [1, 128, 1], strides = [1, 1, 1]} : vector<2x128x1xf32> to vector<1x128x1xf32>
    %34 = vector.shape_cast %33 : vector<1x128x1xf32> to vector<128x1xf32>
    %cst_18 = arith.constant dense<0.000000e+00> : vector<8x1xf32>
    %35 = tpu.matmul %5, %32, %cst_18 {dimension_numbers = #tpu.dot_dimension_numbers<[1], [0], [0], [1], [0, 0, 1, 1], [], []>} : vector<8x128xf32>, vector<128x1xf32>, vector<8x1xf32> -> vector<8x1xf32>
    %cst_19 = arith.constant 0.000000e+00 : f32
    %36 = vector.broadcast %cst_19 : f32 to vector<8x1xf32>
    %37 = arith.maximumf %35, %36 : vector<8x1xf32>
    %cst_20 = arith.constant dense<0.000000e+00> : vector<8x1xf32>
    %38 = tpu.matmul %5, %34, %cst_20 {dimension_numbers = #tpu.dot_dimension_numbers<[1], [0], [0], [1], [0, 0, 1, 1], [], []>} : vector<8x128xf32>, vector<128x1xf32>, vector<8x1xf32> -> vector<8x1xf32>
    %cst_21 = arith.constant 0.000000e+00 : f32
    %39 = vector.broadcast %cst_21 : f32 to vector<8x1xf32>
    %40 = arith.maximumf %38, %39 : vector<8x1xf32>
    %41 = arith.addf %37, %40 : vector<8x1xf32>
    %cst_22 = arith.constant dense<0.000000e+00> : vector<1x128xf32>
    %42 = tpu.matmul %41, %6, %cst_22 {dimension_numbers = #tpu.dot_dimension_numbers<[0], [0], [1], [1], [0, 1, 1, 1], [], []>} : vector<8x1xf32>, vector<8x128xf32>, vector<1x128xf32> -> vector<1x128xf32>
    %43 = arith.negf %42 : vector<1x128xf32>
    %44 = math.exp %43 : vector<1x128xf32>
    %cst_23 = arith.constant 1.000000e+00 : f32
    %45 = vector.broadcast %cst_23 : f32 to vector<1x128xf32>
    %46 = arith.addf %45, %44 : vector<1x128xf32>
    %47 = arith.divf %45, %46 : vector<1x128xf32>
    %c1 = arith.constant 1 : index
    %c0_24 = arith.constant 0 : index
    %c0_25 = arith.constant 0 : index
    %48 = vector.load %arg4[%c1, %c0_24, %c0_25] : memref<2x1x128xf32, #tpu.memory_space<vmem>>, vector<1x1x128xf32>
    %49 = vector.shape_cast %48 : vector<1x1x128xf32> to vector<1x128xf32>
    %50 = vector.shape_cast %47 : vector<1x128xf32> to vector<1x1x128xf32>
    tpu.vector_store %arg4[%c1, %c0_24, %c0_25], %50 {strides = array<i32>} : memref<2x1x128xf32, #tpu.memory_space<vmem>>, vector<1x1x128xf32>,
    return
  }
  func.func @transform_0(%arg0: i32) -> (i32, i32, i32) {
    %c0_i32 = arith.constant 0 : i32
    %c0_i32_0 = arith.constant 0 : i32
    %c0_i32_1 = arith.constant 0 : i32
    return %arg0, %c0_i32, %c0_i32_0 : i32, i32, i32
  }
  func.func @transform_1(%arg0: i32) -> (i32, i32) {
    %c0_i32 = arith.constant 0 : i32
    %c0_i32_0 = arith.constant 0 : i32
    %c0_i32_1 = arith.constant 0 : i32
    return %c0_i32, %c0_i32_0 : i32, i32
  }
  func.func @transform_2(%arg0: i32) -> (i32, i32) {
    %c0_i32 = arith.constant 0 : i32
    %c0_i32_0 = arith.constant 0 : i32
    %c0_i32_1 = arith.constant 0 : i32
    return %c0_i32, %c0_i32_0 : i32, i32
  }
  func.func @transform_3(%arg0: i32) -> (i32, i32, i32) {
    %c0_i32 = arith.constant 0 : i32
    %c0_i32_0 = arith.constant 0 : i32
    %c0_i32_1 = arith.constant 0 : i32
    return %arg0, %c0_i32, %c0_i32_0 : i32, i32, i32
  }
}

</mosaic_0001>

<llo_original>
// kernel: tpu_custom_call.1
$region0: #{tpu_custom_call.1}
  #allocation0 [shape = 'u32[]', space=smem, size = 0x4, offset = 0x4, fixed_abs, tag = 'smem constant byte address 0x4 - core index']
  #allocation1 [shape = 'u32[144,128]{1,0:T(1,128)}', space=vmem, size = 0x12000, scoped, tag = 'internal scratch']
  %s0 = inlined_call_operand.hbm [shape: f32[2,128,256], index: 0, kind: input, shape index: {}]
  %s1 = inlined_call_operand.hbm [shape: f32[8,128], index: 1, kind: input, shape index: {}]
  %s2 = inlined_call_operand.hbm [shape: f32[8,128], index: 2, kind: input, shape index: {}]
  %s3 = inlined_call_operand.hbm [shape: f32[2,1,128], index: 3, kind: output, shape index: {}]
  %s4 = sld [smem:[#allocation0]]
  $region34: #{tpu_custom_call.1} parent=0
    _
  %s6 = ssub.s32 1, %s4
  %s7 = scalar_select 0, %s6, %s4
  $region1: #{tpu_custom_call.1} parent=0
    #allocation2 [shape = 'u8[262144]{0}', space=vmem, size = 0x40000, scoped, tag = 'input window, operand 0, single buffered']
    #allocation3 [shape = 's32[1]{0}', space=sflag, size = 0x4, scoped, tag = 'scoped memory for tpu_custom_call.1']
    #allocation4 [shape = 's32[1]{0}', space=sflag, size = 0x4, scoped, tag = 'scoped memory for tpu_custom_call.1']
    #allocation5 [shape = 'u8[4096]{0}', space=vmem, size = 0x1000, scoped, tag = 'input window, operand 1, single buffered']
    #allocation6 [shape = 's32[1]{0}', space=sflag, size = 0x4, scoped, tag = 'scoped memory for tpu_custom_call.1']
    #allocation7 [shape = 'u8[4096]{0}', space=vmem, size = 0x1000, scoped, tag = 'input window, operand 2, single buffered']
    #allocation8 [shape = 'u8[1024]{0}', space=vmem, size = 0x400, scoped, tag = 'output window, operand 0, single buffered']
    %8 = vsyncpa [#allocation3], 0
    %9 = vsyncpa [#allocation6], 0
    %10 = vsyncpa [#allocation4], 0
    // Predicated region
    $region2: #{tpu_custom_call.1} parent=1 // pred_check
      _
    $region3: #{tpu_custom_call.1} parent=1 // pred_check_branch
      %12 = sbr.rel (0) target = $region5
    $region4: #{tpu_custom_call.1} parent=1 // pred_region
      %s14 = ssub.s32 8192, 8192
      %15 = vsyncadd [#allocation3], %s14
      %s16 = sshll.u32 [#allocation2], 4
      %s17 = int_to_ptr.vmem [resolvable:$true] %s16
      %22 = dma.hbm_to_vmem [thread:$0]  %s0, 8192, %s17, [#allocation3], 256, 256, 16
    $region5: #{tpu_custom_call.1} parent=1 // pred_fallthru
      _
    // Predicated region
    $region6: #{tpu_custom_call.1} parent=1 // pred_check
      _
    $region7: #{tpu_custom_call.1} parent=1 // pred_check_branch
      %24 = sbr.rel (0) target = $region9
    $region8: #{tpu_custom_call.1} parent=1 // pred_region
      %s26 = ssub.s32 128, 128
      %27 = vsyncadd [#allocation6], %s26
      %s29 = sshll.u32 [#allocation5], 4
      %s30 = int_to_ptr.vmem [resolvable:$true] %s29
      %32 = dma.hbm_to_vmem [thread:$0]  %s1, 128, %s30, [#allocation6]
    $region9: #{tpu_custom_call.1} parent=1 // pred_fallthru
      _
    // Predicated region
    $region10: #{tpu_custom_call.1} parent=1 // pred_check
      _
    $region11: #{tpu_custom_call.1} parent=1 // pred_check_branch
      %34 = sbr.rel (0) target = $region13
    $region12: #{tpu_custom_call.1} parent=1 // pred_region
      %s36 = ssub.s32 128, 128
      %37 = vsyncadd [#allocation6], %s36
      %s39 = sshll.u32 [#allocation7], 4
      %s40 = int_to_ptr.vmem [resolvable:$true] %s39
      %42 = dma.hbm_to_vmem [thread:$0]  %s2, 128, %s40, [#allocation6]
    $region13: #{tpu_custom_call.1} parent=1 // pred_fallthru
      _
    // Predicated region
    $region14: #{tpu_custom_call.1} parent=1 // pred_check
      _
    $region15: #{tpu_custom_call.1} parent=1 // pred_check_branch
      %44 = sbr.rel (0) target = $region17
    $region16: #{tpu_custom_call.1} parent=1 // pred_region
      %45 = dma.done [#allocation3], 8192
    $region17: #{tpu_custom_call.1} parent=1 // pred_fallthru
      _
    // Predicated region
    $region18: #{tpu_custom_call.1} parent=1 // pred_check
      _
    $region19: #{tpu_custom_call.1} parent=1 // pred_check_branch
      %47 = sbr.rel (0) target = $region21
    $region20: #{tpu_custom_call.1} parent=1 // pred_region
      %48 = dma.done [#allocation6], 128
    $region21: #{tpu_custom_call.1} parent=1 // pred_fallthru
      _
    // Predicated region
    $region22: #{tpu_custom_call.1} parent=1 // pred_check
      _
    $region23: #{tpu_custom_call.1} parent=1 // pred_check_branch
      %50 = sbr.rel (0) target = $region25
    $region24: #{tpu_custom_call.1} parent=1 // pred_region
      %51 = dma.done [#allocation6], 128
    $region25: #{tpu_custom_call.1} parent=1 // pred_fallthru
      _
    %v52 = vld [vmem:[#allocation2] sm:$0xff]
    %v53 = vld [vmem:[#allocation2 + $0x8] sm:$0xff]
    %v54 = vld [vmem:[#allocation2 + $0x10] sm:$0xff]
    %v55 = vld [vmem:[#allocation2 + $0x18] sm:$0xff]
    %v56 = vld [vmem:[#allocation2 + $0x20] sm:$0xff]
    %v57 = vld [vmem:[#allocation2 + $0x28] sm:$0xff]
    %v58 = vld [vmem:[#allocation2 + $0x30] sm:$0xff]
    %v59 = vld [vmem:[#allocation2 + $0x38] sm:$0xff]
    %v60 = vld [vmem:[#allocation2 + $0x40] sm:$0xff]
    %v61 = vld [vmem:[#allocation2 + $0x48] sm:$0xff]
    %v62 = vld [vmem:[#allocation2 + $0x50] sm:$0xff]
    %v63 = vld [vmem:[#allocation2 + $0x58] sm:$0xff]
    %v64 = vld [vmem:[#allocation2 + $0x60] sm:$0xff]
    %v65 = vld [vmem:[#allocation2 + $0x68] sm:$0xff]
    %v66 = vld [vmem:[#allocation2 + $0x70] sm:$0xff]
    %v67 = vld [vmem:[#allocation2 + $0x78] sm:$0xff]
    %v68 = vld [vmem:[#allocation2 + $0x80] sm:$0xff]
    %v69 = vld [vmem:[#allocation2 + $0x88] sm:$0xff]
    %v70 = vld [vmem:[#allocation2 + $0x90] sm:$0xff]
    %v71 = vld [vmem:[#allocation2 + $0x98] sm:$0xff]
    %v72 = vld [vmem:[#allocation2 + $0xa0] sm:$0xff]
    %v73 = vld [vmem:[#allocation2 + $0xa8] sm:$0xff]
    %v74 = vld [vmem:[#allocation2 + $0xb0] sm:$0xff]
    %v75 = vld [vmem:[#allocation2 + $0xb8] sm:$0xff]
    %v76 = vld [vmem:[#allocation2 + $0xc0] sm:$0xff]
    %v77 = vld [vmem:[#allocation2 + $0xc8] sm:$0xff]
    %v78 = vld [vmem:[#allocation2 + $0xd0] sm:$0xff]
    %v79 = vld [vmem:[#allocation2 + $0xd8] sm:$0xff]
    %v80 = vld [vmem:[#allocation2 + $0xe0] sm:$0xff]
    %v81 = vld [vmem:[#allocation2 + $0xe8] sm:$0xff]
    %v82 = vld [vmem:[#allocation2 + $0xf0] sm:$0xff]
    %v83 = vld [vmem:[#allocation2 + $0xf8] sm:$0xff]
    %v84 = vld [vmem:[#allocation2 + $0x100] sm:$0xff]
    %v85 = vld [vmem:[#allocation2 + $0x108] sm:$0xff]
    %v86 = vld [vmem:[#allocation2 + $0x110] sm:$0xff]
    %v87 = vld [vmem:[#allocation2 + $0x118] sm:$0xff]
    %v88 = vld [vmem:[#allocation2 + $0x120] sm:$0xff]
    %v89 = vld [vmem:[#allocation2 + $0x128] sm:$0xff]
    %v90 = vld [vmem:[#allocation2 + $0x130] sm:$0xff]
    %v91 = vld [vmem:[#allocation2 + $0x138] sm:$0xff]
    %v92 = vld [vmem:[#allocation2 + $0x140] sm:$0xff]
    %v93 = vld [vmem:[#allocation2 + $0x148] sm:$0xff]
    %v94 = vld [vmem:[#allocation2 + $0x150] sm:$0xff]
    %v95 = vld [vmem:[#allocation2 + $0x158] sm:$0xff]
    %v96 = vld [vmem:[#allocation2 + $0x160] sm:$0xff]
    %v97 = vld [vmem:[#allocation2 + $0x168] sm:$0xff]
    %v98 = vld [vmem:[#allocation2 + $0x170] sm:$0xff]
    %v99 = vld [vmem:[#allocation2 + $0x178] sm:$0xff]
    %v100 = vld [vmem:[#allocation2 + $0x180] sm:$0xff]
    %v101 = vld [vmem:[#allocation2 + $0x188] sm:$0xff]
    %v102 = vld [vmem:[#allocation2 + $0x190] sm:$0xff]
    %v103 = vld [vmem:[#allocation2 + $0x198] sm:$0xff]
    %v104 = vld [vmem:[#allocation2 + $0x1a0] sm:$0xff]
    %v105 = vld [vmem:[#allocation2 + $0x1a8] sm:$0xff]
    %v106 = vld [vmem:[#allocation2 + $0x1b0] sm:$0xff]
    %v107 = vld [vmem:[#allocation2 + $0x1b8] sm:$0xff]
    %v108 = vld [vmem:[#allocation2 + $0x1c0] sm:$0xff]
    %v109 = vld [vmem:[#allocation2 + $0x1c8] sm:$0xff]
    %v110 = vld [vmem:[#allocation2 + $0x1d0] sm:$0xff]
    %v111 = vld [vmem:[#allocation2 + $0x1d8] sm:$0xff]
    %v112 = vld [vmem:[#allocation2 + $0x1e0] sm:$0xff]
    %v113 = vld [vmem:[#allocation2 + $0x1e8] sm:$0xff]
    %v114 = vld [vmem:[#allocation2 + $0x1f0] sm:$0xff]
    %v115 = vld [vmem:[#allocation2 + $0x1f8] sm:$0xff]
    %v116 = vadd.f32 %v52, %v53
    %117 = vadd.xlane.f32.xlu0 %v116
    %v118 = vpop.xlane.xlu0 %117
    %v119 = vadd.f32 %v54, %v55
    %120 = vadd.xlane.f32.xlu0 %v119
    %v121 = vpop.xlane.xlu0 %120
    %v122 = vadd.f32 %v56, %v57
    %123 = vadd.xlane.f32.xlu0 %v122
    %v124 = vpop.xlane.xlu0 %123
    %v125 = vadd.f32 %v58, %v59
    %126 = vadd.xlane.f32.xlu0 %v125
    %v127 = vpop.xlane.xlu0 %126
    %v128 = vadd.f32 %v60, %v61
    %129 = vadd.xlane.f32.xlu0 %v128
    %v130 = vpop.xlane.xlu0 %129
    %v131 = vadd.f32 %v62, %v63
    %132 = vadd.xlane.f32.xlu0 %v131
    %v133 = vpop.xlane.xlu0 %132
    %v134 = vadd.f32 %v64, %v65
    %135 = vadd.xlane.f32.xlu0 %v134
    %v136 = vpop.xlane.xlu0 %135
    %v137 = vadd.f32 %v66, %v67
    %138 = vadd.xlane.f32.xlu0 %v137
    %v139 = vpop.xlane.xlu0 %138
    %v140 = vadd.f32 %v68, %v69
    %141 = vadd.xlane.f32.xlu0 %v140
    %v142 = vpop.xlane.xlu0 %141
    %v143 = vadd.f32 %v70, %v71
    %144 = vadd.xlane.f32.xlu0 %v143
    %v145 = vpop.xlane.xlu0 %144
    %v146 = vadd.f32 %v72, %v73
    %147 = vadd.xlane.f32.xlu0 %v146
    %v148 = vpop.xlane.xlu0 %147
    %v149 = vadd.f32 %v74, %v75
    %150 = vadd.xlane.f32.xlu0 %v149
    %v151 = vpop.xlane.xlu0 %150
    %v152 = vadd.f32 %v76, %v77
    %153 = vadd.xlane.f32.xlu0 %v152
    %v154 = vpop.xlane.xlu0 %153
    %v155 = vadd.f32 %v78, %v79
    %156 = vadd.xlane.f32.xlu0 %v155
    %v157 = vpop.xlane.xlu0 %156
    %v158 = vadd.f32 %v80, %v81
    %159 = vadd.xlane.f32.xlu0 %v158
    %v160 = vpop.xlane.xlu0 %159
    %v161 = vadd.f32 %v82, %v83
    %162 = vadd.xlane.f32.xlu0 %v161
    %v163 = vpop.xlane.xlu0 %162
    %v164 = vadd.f32 %v84, %v85
    %165 = vadd.xlane.f32.xlu0 %v164
    %v166 = vpop.xlane.xlu0 %165
    %v167 = vadd.f32 %v86, %v87
    %168 = vadd.xlane.f32.xlu0 %v167
    %v169 = vpop.xlane.xlu0 %168
    %v170 = vadd.f32 %v88, %v89
    %171 = vadd.xlane.f32.xlu0 %v170
    %v172 = vpop.xlane.xlu0 %171
    %v173 = vadd.f32 %v90, %v91
    %174 = vadd.xlane.f32.xlu0 %v173
    %v175 = vpop.xlane.xlu0 %174
    %v176 = vadd.f32 %v92, %v93
    %177 = vadd.xlane.f32.xlu0 %v176
    %v178 = vpop.xlane.xlu0 %177
    %v179 = vadd.f32 %v94, %v95
    %180 = vadd.xlane.f32.xlu0 %v179
    %v181 = vpop.xlane.xlu0 %180
    %v182 = vadd.f32 %v96, %v97
    %183 = vadd.xlane.f32.xlu0 %v182
    %v184 = vpop.xlane.xlu0 %183
    %v185 = vadd.f32 %v98, %v99
    %186 = vadd.xlane.f32.xlu0 %v185
    %v187 = vpop.xlane.xlu0 %186
    %v188 = vadd.f32 %v100, %v101
    %189 = vadd.xlane.f32.xlu0 %v188
    %v190 = vpop.xlane.xlu0 %189
    %v191 = vadd.f32 %v102, %v103
    %192 = vadd.xlane.f32.xlu0 %v191
    %v193 = vpop.xlane.xlu0 %192
    %v194 = vadd.f32 %v104, %v105
    %195 = vadd.xlane.f32.xlu0 %v194
    %v196 = vpop.xlane.xlu0 %195
    %v197 = vadd.f32 %v106, %v107
    %198 = vadd.xlane.f32.xlu0 %v197
    %v199 = vpop.xlane.xlu0 %198
    %v200 = vadd.f32 %v108, %v109
    %201 = vadd.xlane.f32.xlu0 %v200
    %v202 = vpop.xlane.xlu0 %201
    %v203 = vadd.f32 %v110, %v111
    %204 = vadd.xlane.f32.xlu0 %v203
    %v205 = vpop.xlane.xlu0 %204
    %v206 = vadd.f32 %v112, %v113
    %207 = vadd.xlane.f32.xlu0 %v206
    %v208 = vpop.xlane.xlu0 %207
    %v209 = vadd.f32 %v114, %v115
    %210 = vadd.xlane.f32.xlu0 %v209
    %v211 = vpop.xlane.xlu0 %210
    %v212 = vmax.f32 %v52, %v53
    %213 = vmax.xlane.f32.xlu0 %v212
    %v214 = vpop.xlane.xlu0 %213
    %v215 = vmax.f32 %v54, %v55
    %216 = vmax.xlane.f32.xlu0 %v215
    %v217 = vpop.xlane.xlu0 %216
    %v218 = vmax.f32 %v56, %v57
    %219 = vmax.xlane.f32.xlu0 %v218
    %v220 = vpop.xlane.xlu0 %219
    %v221 = vmax.f32 %v58, %v59
    %222 = vmax.xlane.f32.xlu0 %v221
    %v223 = vpop.xlane.xlu0 %222
    %v224 = vmax.f32 %v60, %v61
    %225 = vmax.xlane.f32.xlu0 %v224
    %v226 = vpop.xlane.xlu0 %225
    %v227 = vmax.f32 %v62, %v63
    %228 = vmax.xlane.f32.xlu0 %v227
    %v229 = vpop.xlane.xlu0 %228
    %v230 = vmax.f32 %v64, %v65
    %231 = vmax.xlane.f32.xlu0 %v230
    %v232 = vpop.xlane.xlu0 %231
    %v233 = vmax.f32 %v66, %v67
    %234 = vmax.xlane.f32.xlu0 %v233
    %v235 = vpop.xlane.xlu0 %234
    %v236 = vmax.f32 %v68, %v69
    %237 = vmax.xlane.f32.xlu0 %v236
    %v238 = vpop.xlane.xlu0 %237
    %v239 = vmax.f32 %v70, %v71
    %240 = vmax.xlane.f32.xlu0 %v239
    %v241 = vpop.xlane.xlu0 %240
    %v242 = vmax.f32 %v72, %v73
    %243 = vmax.xlane.f32.xlu0 %v242
    %v244 = vpop.xlane.xlu0 %243
    %v245 = vmax.f32 %v74, %v75
    %246 = vmax.xlane.f32.xlu0 %v245
    %v247 = vpop.xlane.xlu0 %246
    %v248 = vmax.f32 %v76, %v77
    %249 = vmax.xlane.f32.xlu0 %v248
    %v250 = vpop.xlane.xlu0 %249
    %v251 = vmax.f32 %v78, %v79
    %252 = vmax.xlane.f32.xlu0 %v251
    %v253 = vpop.xlane.xlu0 %252
    %v254 = vmax.f32 %v80, %v81
    %255 = vmax.xlane.f32.xlu0 %v254
    %v256 = vpop.xlane.xlu0 %255
    %v257 = vmax.f32 %v82, %v83
    %258 = vmax.xlane.f32.xlu0 %v257
    %v259 = vpop.xlane.xlu0 %258
    %v260 = vmax.f32 %v84, %v85
    %261 = vmax.xlane.f32.xlu0 %v260
    %v262 = vpop.xlane.xlu0 %261
    %v263 = vmax.f32 %v86, %v87
    %264 = vmax.xlane.f32.xlu0 %v263
    %v265 = vpop.xlane.xlu0 %264
    %v266 = vmax.f32 %v88, %v89
    %267 = vmax.xlane.f32.xlu0 %v266
    %v268 = vpop.xlane.xlu0 %267
    %v269 = vmax.f32 %v90, %v91
    %270 = vmax.xlane.f32.xlu0 %v269
    %v271 = vpop.xlane.xlu0 %270
    %v272 = vmax.f32 %v92, %v93
    %273 = vmax.xlane.f32.xlu0 %v272
    %v274 = vpop.xlane.xlu0 %273
    %v275 = vmax.f32 %v94, %v95
    %276 = vmax.xlane.f32.xlu0 %v275
    %v277 = vpop.xlane.xlu0 %276
    %v278 = vmax.f32 %v96, %v97
    %279 = vmax.xlane.f32.xlu0 %v278
    %v280 = vpop.xlane.xlu0 %279
    %v281 = vmax.f32 %v98, %v99
    %282 = vmax.xlane.f32.xlu0 %v281
    %v283 = vpop.xlane.xlu0 %282
    %v284 = vmax.f32 %v100, %v101
    %285 = vmax.xlane.f32.xlu0 %v284
    %v286 = vpop.xlane.xlu0 %285
    %v287 = vmax.f32 %v102, %v103
    %288 = vmax.xlane.f32.xlu0 %v287
    %v289 = vpop.xlane.xlu0 %288
    %v290 = vmax.f32 %v104, %v105
    %291 = vmax.xlane.f32.xlu0 %v290
    %v292 = vpop.xlane.xlu0 %291
    %v293 = vmax.f32 %v106, %v107
    %294 = vmax.xlane.f32.xlu0 %v293
    %v295 = vpop.xlane.xlu0 %294
    %v296 = vmax.f32 %v108, %v109
    %297 = vmax.xlane.f32.xlu0 %v296
    %v298 = vpop.xlane.xlu0 %297
    %v299 = vmax.f32 %v110, %v111
    %300 = vmax.xlane.f32.xlu0 %v299
    %v301 = vpop.xlane.xlu0 %300
    %v302 = vmax.f32 %v112, %v113
    %303 = vmax.xlane.f32.xlu0 %v302
    %v304 = vpop.xlane.xlu0 %303
    %v305 = vmax.f32 %v114, %v115
    %306 = vmax.xlane.f32.xlu0 %v305
    %v307 = vpop.xlane.xlu0 %306
    %v308 = vld [vmem:[#allocation5] sm:$0xff]
    %v309 = vld [vmem:[#allocation7] sm:$0xff]
    %v310 = vmul.f32 %v118, 0.00390625
    %v311 = vmul.f32 %v121, 0.00390625
    %v312 = vmul.f32 %v124, 0.00390625
    %v313 = vmul.f32 %v127, 0.00390625
    %v314 = vmul.f32 %v130, 0.00390625
    %v315 = vmul.f32 %v133, 0.00390625
    %v316 = vmul.f32 %v136, 0.00390625
    %v317 = vmul.f32 %v139, 0.00390625
    %v318 = vmul.f32 %v142, 0.00390625
    %v319 = vmul.f32 %v145, 0.00390625
    %v320 = vmul.f32 %v148, 0.00390625
    %v321 = vmul.f32 %v151, 0.00390625
    %v322 = vmul.f32 %v154, 0.00390625
    %v323 = vmul.f32 %v157, 0.00390625
    %v324 = vmul.f32 %v160, 0.00390625
    %v325 = vmul.f32 %v163, 0.00390625
    %326 = vmatprep.subr.mxu0 0.0
    %327 = vmatpush1.msra.mxu0 %v310
    %328 = vmatprep.subr.mxu0 0.0
    %329 = vmatpush1.msra.mxu0 %v311
    %330 = vmatprep.subr.mxu0 0.0
    %331 = vmatpush1.msra.mxu0 %v312
    %332 = vmatprep.subr.mxu0 0.0
    %333 = vmatpush1.msra.mxu0 %v313
    %334 = vmatprep.subr.mxu0 0.0
    %335 = vmatpush1.msra.mxu0 %v314
    %336 = vmatprep.subr.mxu0 0.0
    %337 = vmatpush1.msra.mxu0 %v315
    %338 = vmatprep.subr.mxu0 0.0
    %339 = vmatpush1.msra.mxu0 %v316
    %340 = vmatprep.subr.mxu0 0.0
    %341 = vmatpush1.msra.mxu0 %v317
    %342 = vmatprep.subr.mxu0 0.0
    %343 = vmatpush1.msra.mxu0 %v318
    %344 = vmatprep.subr.mxu0 0.0
    %345 = vmatpush1.msra.mxu0 %v319
    %346 = vmatprep.subr.mxu0 0.0
    %347 = vmatpush1.msra.mxu0 %v320
    %348 = vmatprep.subr.mxu0 0.0
    %349 = vmatpush1.msra.mxu0 %v321
    %350 = vmatprep.subr.mxu0 0.0
    %351 = vmatpush1.msra.mxu0 %v322
    %352 = vmatprep.subr.mxu0 0.0
    %353 = vmatpush1.msra.mxu0 %v323
    %354 = vmatprep.subr.mxu0 0.0
    %355 = vmatpush1.msra.mxu0 %v324
    %356 = vmatprep.subr.mxu0 0.0
    %357 = vmatpush1.msra.mxu0 %v325
    %358 = vmatprep.subr.mxu0 0.0
    %359 = vmatpush1.msra.mxu0 0.0
    %360 = vmatprep.subr.mxu0 0.0
    %361 = vmatpush1.msra.mxu0 0.0
    %362 = vmatprep.subr.mxu0 0.0
    %363 = vmatpush1.msra.mxu0 0.0
    %364 = vmatprep.subr.mxu0 0.0
    %365 = vmatpush1.msra.mxu0 0.0
    %366 = vmatprep.subr.mxu0 0.0
    %367 = vmatpush1.msra.mxu0 0.0
    %368 = vmatprep.subr.mxu0 0.0
    %369 = vmatpush1.msra.mxu0 0.0
    %370 = vmatprep.subr.mxu0 0.0
    %371 = vmatpush1.msra.mxu0 0.0
    %372 = vmatprep.subr.mxu0 0.0
    %373 = vmatpush1.msra.mxu0 0.0
    %374 = vmatprep.subr.mxu0 0.0
    %375 = vmatpush1.msra.mxu0 0.0
    %376 = vmatprep.subr.mxu0 0.0
    %377 = vmatpush1.msra.mxu0 0.0
    %378 = vmatprep.subr.mxu0 0.0
    %379 = vmatpush1.msra.mxu0 0.0
    %380 = vmatprep.subr.mxu0 0.0
    %381 = vmatpush1.msra.mxu0 0.0
    %382 = vmatprep.subr.mxu0 0.0
    %383 = vmatpush1.msra.mxu0 0.0
    %384 = vmatprep.subr.mxu0 0.0
    %385 = vmatpush1.msra.mxu0 0.0
    %386 = vmatprep.subr.mxu0 0.0
    %387 = vmatpush1.msra.mxu0 0.0
    %388 = vmatprep.subr.mxu0 0.0
    %389 = vmatpush1.msra.mxu0 0.0
    %390 = vmatprep.mubr.f32.mxu0 0.0
    %391 = vmatmul.mubr.f32.gmra.mrb[0].mxu0 %v308
    %v392 = vpop.f32.mrb[0].mxu0
    %v393 = vadd.f32 0.0, %v392
    %v394 = vpop.f32.mrb[0].mxu0
    %395 = vdwg.mxu0
    %v396 = vmax.f32 %v393, 0.0
    %397 = vmatprep.subr.mxu0 0.0
    %398 = vmatpush1.msra.mxu0 %v214
    %399 = vmatprep.subr.mxu0 0.0
    %400 = vmatpush1.msra.mxu0 %v217
    %401 = vmatprep.subr.mxu0 0.0
    %402 = vmatpush1.msra.mxu0 %v220
    %403 = vmatprep.subr.mxu0 0.0
    %404 = vmatpush1.msra.mxu0 %v223
    %405 = vmatprep.subr.mxu0 0.0
    %406 = vmatpush1.msra.mxu0 %v226
    %407 = vmatprep.subr.mxu0 0.0
    %408 = vmatpush1.msra.mxu0 %v229
    %409 = vmatprep.subr.mxu0 0.0
    %410 = vmatpush1.msra.mxu0 %v232
    %411 = vmatprep.subr.mxu0 0.0
    %412 = vmatpush1.msra.mxu0 %v235
    %413 = vmatprep.subr.mxu0 0.0
    %414 = vmatpush1.msra.mxu0 %v238
    %415 = vmatprep.subr.mxu0 0.0
    %416 = vmatpush1.msra.mxu0 %v241
    %417 = vmatprep.subr.mxu0 0.0
    %418 = vmatpush1.msra.mxu0 %v244
    %419 = vmatprep.subr.mxu0 0.0
    %420 = vmatpush1.msra.mxu0 %v247
    %421 = vmatprep.subr.mxu0 0.0
    %422 = vmatpush1.msra.mxu0 %v250
    %423 = vmatprep.subr.mxu0 0.0
    %424 = vmatpush1.msra.mxu0 %v253
    %425 = vmatprep.subr.mxu0 0.0
    %426 = vmatpush1.msra.mxu0 %v256
    %427 = vmatprep.subr.mxu0 0.0
    %428 = vmatpush1.msra.mxu0 %v259
    %429 = vmatprep.subr.mxu0 0.0
    %430 = vmatpush1.msra.mxu0 0.0
    %431 = vmatprep.subr.mxu0 0.0
    %432 = vmatpush1.msra.mxu0 0.0
    %433 = vmatprep.subr.mxu0 0.0
    %434 = vmatpush1.msra.mxu0 0.0
    %435 = vmatprep.subr.mxu0 0.0
    %436 = vmatpush1.msra.mxu0 0.0
    %437 = vmatprep.subr.mxu0 0.0
    %438 = vmatpush1.msra.mxu0 0.0
    %439 = vmatprep.subr.mxu0 0.0
    %440 = vmatpush1.msra.mxu0 0.0
    %441 = vmatprep.subr.mxu0 0.0
    %442 = vmatpush1.msra.mxu0 0.0
    %443 = vmatprep.subr.mxu0 0.0
    %444 = vmatpush1.msra.mxu0 0.0
    %445 = vmatprep.subr.mxu0 0.0
    %446 = vmatpush1.msra.mxu0 0.0
    %447 = vmatprep.subr.mxu0 0.0
    %448 = vmatpush1.msra.mxu0 0.0
    %449 = vmatprep.subr.mxu0 0.0
    %450 = vmatpush1.msra.mxu0 0.0
    %451 = vmatprep.subr.mxu0 0.0
    %452 = vmatpush1.msra.mxu0 0.0
    %453 = vmatprep.subr.mxu0 0.0
    %454 = vmatpush1.msra.mxu0 0.0
    %455 = vmatprep.subr.mxu0 0.0
    %456 = vmatpush1.msra.mxu0 0.0
    %457 = vmatprep.subr.mxu0 0.0
    %458 = vmatpush1.msra.mxu0 0.0
    %459 = vmatprep.subr.mxu0 0.0
    %460 = vmatpush1.msra.mxu0 0.0
    %461 = vmatprep.mubr.f32.mxu0 0.0
    %462 = vmatmul.mubr.f32.gmra.mrb[0].mxu0 %v308
    %v463 = vpop.f32.mrb[0].mxu0
    %v464 = vadd.f32 0.0, %v463
    %v465 = vpop.f32.mrb[0].mxu0
    %466 = vdwg.mxu0
    %v467 = vmax.f32 %v464, 0.0
    %v468 = vadd.f32 %v396, %v467
    %469 = vxpose.xlu0.b32.start [1/16] %v468, 128
    %470 = vxpose.xlu0.b32.cont [2/16] 0.0, 128
    %471 = vxpose.xlu0.b32.cont [3/16] 0.0, 128
    %472 = vxpose.xlu0.b32.cont [4/16] 0.0, 128
    %473 = vxpose.xlu0.b32.cont [5/16] 0.0, 128
    %474 = vxpose.xlu0.b32.cont [6/16] 0.0, 128
    %475 = vxpose.xlu0.b32.cont [7/16] 0.0, 128
    %476 = vxpose.xlu0.b32.cont [8/16] 0.0, 128
    %477 = vxpose.xlu0.b32.cont [9/16] 0.0, 128
    %478 = vxpose.xlu0.b32.cont [10/16] 0.0, 128
    %479 = vxpose.xlu0.b32.cont [11/16] 0.0, 128
    %480 = vxpose.xlu0.b32.cont [12/16] 0.0, 128
    %481 = vxpose.xlu0.b32.cont [13/16] 0.0, 128
    %482 = vxpose.xlu0.b32.cont [14/16] 0.0, 128
    %483 = vxpose.xlu0.b32.cont [15/16] 0.0, 128
    %484 = vxpose.xlu0.b32.end [16/16] 0.0, 128
    %v485 = vpop.trf.xlu0
    %v486 = vpop.trf.xlu0
    %v487 = vpop.trf.xlu0
    %v488 = vpop.trf.xlu0
    %v489 = vpop.trf.xlu0
    %v490 = vpop.trf.xlu0
    %v491 = vpop.trf.xlu0
    %v492 = vpop.trf.xlu0
    %v493 = vpop.trf.xlu0
    %v494 = vpop.trf.xlu0
    %v495 = vpop.trf.xlu0
    %v496 = vpop.trf.xlu0
    %v497 = vpop.trf.xlu0
    %v498 = vpop.trf.xlu0
    %v499 = vpop.trf.xlu0
    %v500 = vpop.trf.xlu0
    %vm501 = vcmask 64512
    %v503 = vsel %vm501, %v485, 0
    %505 = vmatprep.subr.mxu0 0.0
    %506 = vmatpush1.msra.mxu0 %v309
    %507 = vmatprep.subr.mxu0 0.0
    %508 = vmatpush1.msra.mxu0 0.0
    %509 = vmatprep.subr.mxu0 0.0
    %510 = vmatpush1.msra.mxu0 0.0
    %511 = vmatprep.subr.mxu0 0.0
    %512 = vmatpush1.msra.mxu0 0.0
    %513 = vmatprep.subr.mxu0 0.0
    %514 = vmatpush1.msra.mxu0 0.0
    %515 = vmatprep.subr.mxu0 0.0
    %516 = vmatpush1.msra.mxu0 0.0
    %517 = vmatprep.subr.mxu0 0.0
    %518 = vmatpush1.msra.mxu0 0.0
    %519 = vmatprep.subr.mxu0 0.0
    %520 = vmatpush1.msra.mxu0 0.0
    %521 = vmatprep.subr.mxu0 0.0
    %522 = vmatpush1.msra.mxu0 0.0
    %523 = vmatprep.subr.mxu0 0.0
    %524 = vmatpush1.msra.mxu0 0.0
    %525 = vmatprep.subr.mxu0 0.0
    %526 = vmatpush1.msra.mxu0 0.0
    %527 = vmatprep.subr.mxu0 0.0
    %528 = vmatpush1.msra.mxu0 0.0
    %529 = vmatprep.subr.mxu0 0.0
    %530 = vmatpush1.msra.mxu0 0.0
    %531 = vmatprep.subr.mxu0 0.0
    %532 = vmatpush1.msra.mxu0 0.0
    %533 = vmatprep.subr.mxu0 0.0
    %534 = vmatpush1.msra.mxu0 0.0
    %535 = vmatprep.subr.mxu0 0.0
    %536 = vmatpush1.msra.mxu0 0.0
    %537 = vmatprep.subr.mxu0 0.0
    %538 = vmatpush1.msra.mxu0 0.0
    %539 = vmatprep.subr.mxu0 0.0
    %540 = vmatpush1.msra.mxu0 0.0
    %541 = vmatprep.subr.mxu0 0.0
    %542 = vmatpush1.msra.mxu0 0.0
    %543 = vmatprep.subr.mxu0 0.0
    %544 = vmatpush1.msra.mxu0 0.0
    %545 = vmatprep.subr.mxu0 0.0
    %546 = vmatpush1.msra.mxu0 0.0
    %547 = vmatprep.subr.mxu0 0.0
    %548 = vmatpush1.msra.mxu0 0.0
    %549 = vmatprep.subr.mxu0 0.0
    %550 = vmatpush1.msra.mxu0 0.0
    %551 = vmatprep.subr.mxu0 0.0
    %552 = vmatpush1.msra.mxu0 0.0
    %553 = vmatprep.subr.mxu0 0.0
    %554 = vmatpush1.msra.mxu0 0.0
    %555 = vmatprep.subr.mxu0 0.0
    %556 = vmatpush1.msra.mxu0 0.0
    %557 = vmatprep.subr.mxu0 0.0
    %558 = vmatpush1.msra.mxu0 0.0
    %559 = vmatprep.subr.mxu0 0.0
    %560 = vmatpush1.msra.mxu0 0.0
    %561 = vmatprep.subr.mxu0 0.0
    %562 = vmatpush1.msra.mxu0 0.0
    %563 = vmatprep.subr.mxu0 0.0
    %564 = vmatpush1.msra.mxu0 0.0
    %565 = vmatprep.subr.mxu0 0.0
    %566 = vmatpush1.msra.mxu0 0.0
    %567 = vmatprep.subr.mxu0 0.0
    %568 = vmatpush1.msra.mxu0 0.0
    %569 = vmatprep.mubr.f32.mxu0 0.0
    %570 = vmatmul.mubr.f32.gmra.mrb[0].mxu0 %v503
    %v571 = vpop.f32.mrb[0].mxu0
    %v572 = vadd.f32 0.0, %v571
    %v573 = vpop.f32.mrb[0].mxu0
    %574 = vdwg.mxu0
    %v575 = vxor.u32 %v572, 2147483648
    %v576 = vmul.f32 %v575, 1.442695
    %v577 = vpow.pop %v576
    %v578 = vadd.f32 %v577, 1.0
    %v579 = vrcp.pop %v578
    %v580 = vmul.f32 1.0, %v579
    %581 = vst [vmem:[#allocation8] sm:$0x1] %v580
    %v582 = vmul.f32 %v166, 0.00390625
    %v583 = vmul.f32 %v169, 0.00390625
    %v584 = vmul.f32 %v172, 0.00390625
    %v585 = vmul.f32 %v175, 0.00390625
    %v586 = vmul.f32 %v178, 0.00390625
    %v587 = vmul.f32 %v181, 0.00390625
    %v588 = vmul.f32 %v184, 0.00390625
    %v589 = vmul.f32 %v187, 0.00390625
    %v590 = vmul.f32 %v190, 0.00390625
    %v591 = vmul.f32 %v193, 0.00390625
    %v592 = vmul.f32 %v196, 0.00390625
    %v593 = vmul.f32 %v199, 0.00390625
    %v594 = vmul.f32 %v202, 0.00390625
    %v595 = vmul.f32 %v205, 0.00390625
    %v596 = vmul.f32 %v208, 0.00390625
    %v597 = vmul.f32 %v211, 0.00390625
    %598 = vmatprep.subr.mxu0 0.0
    %599 = vmatpush1.msra.mxu0 %v582
    %600 = vmatprep.subr.mxu0 0.0
    %601 = vmatpush1.msra.mxu0 %v583
    %602 = vmatprep.subr.mxu0 0.0
    %603 = vmatpush1.msra.mxu0 %v584
    %604 = vmatprep.subr.mxu0 0.0
    %605 = vmatpush1.msra.mxu0 %v585
    %606 = vmatprep.subr.mxu0 0.0
    %607 = vmatpush1.msra.mxu0 %v586
    %608 = vmatprep.subr.mxu0 0.0
    %609 = vmatpush1.msra.mxu0 %v587
    %610 = vmatprep.subr.mxu0 0.0
    %611 = vmatpush1.msra.mxu0 %v588
    %612 = vmatprep.subr.mxu0 0.0
    %613 = vmatpush1.msra.mxu0 %v589
    %614 = vmatprep.subr.mxu0 0.0
    %615 = vmatpush1.msra.mxu0 %v590
    %616 = vmatprep.subr.mxu0 0.0
    %617 = vmatpush1.msra.mxu0 %v591
    %618 = vmatprep.subr.mxu0 0.0
    %619 = vmatpush1.msra.mxu0 %v592
    %620 = vmatprep.subr.mxu0 0.0
    %621 = vmatpush1.msra.mxu0 %v593
    %622 = vmatprep.subr.mxu0 0.0
    %623 = vmatpush1.msra.mxu0 %v594
    %624 = vmatprep.subr.mxu0 0.0
    %625 = vmatpush1.msra.mxu0 %v595
    %626 = vmatprep.subr.mxu0 0.0
    %627 = vmatpush1.msra.mxu0 %v596
    %628 = vmatprep.subr.mxu0 0.0
    %629 = vmatpush1.msra.mxu0 %v597
    %630 = vmatprep.subr.mxu0 0.0
    %631 = vmatpush1.msra.mxu0 0.0
    %632 = vmatprep.subr.mxu0 0.0
    %633 = vmatpush1.msra.mxu0 0.0
    %634 = vmatprep.subr.mxu0 0.0
    %635 = vmatpush1.msra.mxu0 0.0
    %636 = vmatprep.subr.mxu0 0.0
    %637 = vmatpush1.msra.mxu0 0.0
    %638 = vmatprep.subr.mxu0 0.0
    %639 = vmatpush1.msra.mxu0 0.0
    %640 = vmatprep.subr.mxu0 0.0
    %641 = vmatpush1.msra.mxu0 0.0
    %642 = vmatprep.subr.mxu0 0.0
    %643 = vmatpush1.msra.mxu0 0.0
    %644 = vmatprep.subr.mxu0 0.0
    %645 = vmatpush1.msra.mxu0 0.0
    %646 = vmatprep.subr.mxu0 0.0
    %647 = vmatpush1.msra.mxu0 0.0
    %648 = vmatprep.subr.mxu0 0.0
    %649 = vmatpush1.msra.mxu0 0.0
    %650 = vmatprep.subr.mxu0 0.0
    %651 = vmatpush1.msra.mxu0 0.0
    %652 = vmatprep.subr.mxu0 0.0
    %653 = vmatpush1.msra.mxu0 0.0
    %654 = vmatprep.subr.mxu0 0.0
    %655 = vmatpush1.msra.mxu0 0.0
    %656 = vmatprep.subr.mxu0 0.0
    %657 = vmatpush1.msra.mxu0 0.0
    %658 = vmatprep.subr.mxu0 0.0
    %659 = vmatpush1.msra.mxu0 0.0
    %660 = vmatprep.subr.mxu0 0.0
    %661 = vmatpush1.msra.mxu0 0.0
    %662 = vmatprep.mubr.f32.mxu0 0.0
    %663 = vmatmul.mubr.f32.gmra.mrb[0].mxu0 %v308
    %v664 = vpop.f32.mrb[0].mxu0
    %v665 = vadd.f32 0.0, %v664
    %v666 = vpop.f32.mrb[0].mxu0
    %667 = vdwg.mxu0
    %v668 = vmax.f32 %v665, 0.0
    %669 = vmatprep.subr.mxu0 0.0
    %670 = vmatpush1.msra.mxu0 %v262
    %671 = vmatprep.subr.mxu0 0.0
    %672 = vmatpush1.msra.mxu0 %v265
    %673 = vmatprep.subr.mxu0 0.0
    %674 = vmatpush1.msra.mxu0 %v268
    %675 = vmatprep.subr.mxu0 0.0
    %676 = vmatpush1.msra.mxu0 %v271
    %677 = vmatprep.subr.mxu0 0.0
    %678 = vmatpush1.msra.mxu0 %v274
    %679 = vmatprep.subr.mxu0 0.0
    %680 = vmatpush1.msra.mxu0 %v277
    %681 = vmatprep.subr.mxu0 0.0
    %682 = vmatpush1.msra.mxu0 %v280
    %683 = vmatprep.subr.mxu0 0.0
    %684 = vmatpush1.msra.mxu0 %v283
    %685 = vmatprep.subr.mxu0 0.0
    %686 = vmatpush1.msra.mxu0 %v286
    %687 = vmatprep.subr.mxu0 0.0
    %688 = vmatpush1.msra.mxu0 %v289
    %689 = vmatprep.subr.mxu0 0.0
    %690 = vmatpush1.msra.mxu0 %v292
    %691 = vmatprep.subr.mxu0 0.0
    %692 = vmatpush1.msra.mxu0 %v295
    %693 = vmatprep.subr.mxu0 0.0
    %694 = vmatpush1.msra.mxu0 %v298
    %695 = vmatprep.subr.mxu0 0.0
    %696 = vmatpush1.msra.mxu0 %v301
    %697 = vmatprep.subr.mxu0 0.0
    %698 = vmatpush1.msra.mxu0 %v304
    %699 = vmatprep.subr.mxu0 0.0
    %700 = vmatpush1.msra.mxu0 %v307
    %701 = vmatprep.subr.mxu0 0.0
    %702 = vmatpush1.msra.mxu0 0.0
    %703 = vmatprep.subr.mxu0 0.0
    %704 = vmatpush1.msra.mxu0 0.0
    %705 = vmatprep.subr.mxu0 0.0
    %706 = vmatpush1.msra.mxu0 0.0
    %707 = vmatprep.subr.mxu0 0.0
    %708 = vmatpush1.msra.mxu0 0.0
    %709 = vmatprep.subr.mxu0 0.0
    %710 = vmatpush1.msra.mxu0 0.0
    %711 = vmatprep.subr.mxu0 0.0
    %712 = vmatpush1.msra.mxu0 0.0
    %713 = vmatprep.subr.mxu0 0.0
    %714 = vmatpush1.msra.mxu0 0.0
    %715 = vmatprep.subr.mxu0 0.0
    %716 = vmatpush1.msra.mxu0 0.0
    %717 = vmatprep.subr.mxu0 0.0
    %718 = vmatpush1.msra.mxu0 0.0
    %719 = vmatprep.subr.mxu0 0.0
    %720 = vmatpush1.msra.mxu0 0.0
    %721 = vmatprep.subr.mxu0 0.0
    %722 = vmatpush1.msra.mxu0 0.0
    %723 = vmatprep.subr.mxu0 0.0
    %724 = vmatpush1.msra.mxu0 0.0
    %725 = vmatprep.subr.mxu0 0.0
    %726 = vmatpush1.msra.mxu0 0.0
    %727 = vmatprep.subr.mxu0 0.0
    %728 = vmatpush1.msra.mxu0 0.0
    %729 = vmatprep.subr.mxu0 0.0
    %730 = vmatpush1.msra.mxu0 0.0
    %731 = vmatprep.subr.mxu0 0.0
    %732 = vmatpush1.msra.mxu0 0.0
    %733 = vmatprep.mubr.f32.mxu0 0.0
    %734 = vmatmul.mubr.f32.gmra.mrb[0].mxu0 %v308
    %v735 = vpop.f32.mrb[0].mxu0
    %v736 = vadd.f32 0.0, %v735
    %v737 = vpop.f32.mrb[0].mxu0
    %738 = vdwg.mxu0
    %v739 = vmax.f32 %v736, 0.0
    %v740 = vadd.f32 %v668, %v739
    %741 = vxpose.xlu0.b32.start [1/16] %v740, 128
    %742 = vxpose.xlu0.b32.cont [2/16] 0.0, 128
    %743 = vxpose.xlu0.b32.cont [3/16] 0.0, 128
    %744 = vxpose.xlu0.b32.cont [4/16] 0.0, 128
    %745 = vxpose.xlu0.b32.cont [5/16] 0.0, 128
    %746 = vxpose.xlu0.b32.cont [6/16] 0.0, 128
    %747 = vxpose.xlu0.b32.cont [7/16] 0.0, 128
    %748 = vxpose.xlu0.b32.cont [8/16] 0.0, 128
    %749 = vxpose.xlu0.b32.cont [9/16] 0.0, 128
    %750 = vxpose.xlu0.b32.cont [10/16] 0.0, 128
    %751 = vxpose.xlu0.b32.cont [11/16] 0.0, 128
    %752 = vxpose.xlu0.b32.cont [12/16] 0.0, 128
    %753 = vxpose.xlu0.b32.cont [13/16] 0.0, 128
    %754 = vxpose.xlu0.b32.cont [14/16] 0.0, 128
    %755 = vxpose.xlu0.b32.cont [15/16] 0.0, 128
    %756 = vxpose.xlu0.b32.end [16/16] 0.0, 128
    %v757 = vpop.trf.xlu0
    %v758 = vpop.trf.xlu0
    %v759 = vpop.trf.xlu0
    %v760 = vpop.trf.xlu0
    %v761 = vpop.trf.xlu0
    %v762 = vpop.trf.xlu0
    %v763 = vpop.trf.xlu0
    %v764 = vpop.trf.xlu0
    %v765 = vpop.trf.xlu0
    %v766 = vpop.trf.xlu0
    %v767 = vpop.trf.xlu0
    %v768 = vpop.trf.xlu0
    %v769 = vpop.trf.xlu0
    %v770 = vpop.trf.xlu0
    %v771 = vpop.trf.xlu0
    %v772 = vpop.trf.xlu0
    %v774 = vsel %vm501, %v757, 0
    %776 = vmatprep.subr.mxu0 0.0
    %777 = vmatpush1.msra.mxu0 %v309
    %778 = vmatprep.subr.mxu0 0.0
    %779 = vmatpush1.msra.mxu0 0.0
    %780 = vmatprep.subr.mxu0 0.0
    %781 = vmatpush1.msra.mxu0 0.0
    %782 = vmatprep.subr.mxu0 0.0
    %783 = vmatpush1.msra.mxu0 0.0
    %784 = vmatprep.subr.mxu0 0.0
    %785 = vmatpush1.msra.mxu0 0.0
    %786 = vmatprep.subr.mxu0 0.0
    %787 = vmatpush1.msra.mxu0 0.0
    %788 = vmatprep.subr.mxu0 0.0
    %789 = vmatpush1.msra.mxu0 0.0
    %790 = vmatprep.subr.mxu0 0.0
    %791 = vmatpush1.msra.mxu0 0.0
    %792 = vmatprep.subr.mxu0 0.0
    %793 = vmatpush1.msra.mxu0 0.0
    %794 = vmatprep.subr.mxu0 0.0
    %795 = vmatpush1.msra.mxu0 0.0
    %796 = vmatprep.subr.mxu0 0.0
    %797 = vmatpush1.msra.mxu0 0.0
    %798 = vmatprep.subr.mxu0 0.0
    %799 = vmatpush1.msra.mxu0 0.0
    %800 = vmatprep.subr.mxu0 0.0
    %801 = vmatpush1.msra.mxu0 0.0
    %802 = vmatprep.subr.mxu0 0.0
    %803 = vmatpush1.msra.mxu0 0.0
    %804 = vmatprep.subr.mxu0 0.0
    %805 = vmatpush1.msra.mxu0 0.0
    %806 = vmatprep.subr.mxu0 0.0
    %807 = vmatpush1.msra.mxu0 0.0
    %808 = vmatprep.subr.mxu0 0.0
    %809 = vmatpush1.msra.mxu0 0.0
    %810 = vmatprep.subr.mxu0 0.0
    %811 = vmatpush1.msra.mxu0 0.0
    %812 = vmatprep.subr.mxu0 0.0
    %813 = vmatpush1.msra.mxu0 0.0
    %814 = vmatprep.subr.mxu0 0.0
    %815 = vmatpush1.msra.mxu0 0.0
    %816 = vmatprep.subr.mxu0 0.0
    %817 = vmatpush1.msra.mxu0 0.0
    %818 = vmatprep.subr.mxu0 0.0
    %819 = vmatpush1.msra.mxu0 0.0
    %820 = vmatprep.subr.mxu0 0.0
    %821 = vmatpush1.msra.mxu0 0.0
    %822 = vmatprep.subr.mxu0 0.0
    %823 = vmatpush1.msra.mxu0 0.0
    %824 = vmatprep.subr.mxu0 0.0
    %825 = vmatpush1.msra.mxu0 0.0
    %826 = vmatprep.subr.mxu0 0.0
    %827 = vmatpush1.msra.mxu0 0.0
    %828 = vmatprep.subr.mxu0 0.0
    %829 = vmatpush1.msra.mxu0 0.0
    %830 = vmatprep.subr.mxu0 0.0
    %831 = vmatpush1.msra.mxu0 0.0
    %832 = vmatprep.subr.mxu0 0.0
    %833 = vmatpush1.msra.mxu0 0.0
    %834 = vmatprep.subr.mxu0 0.0
    %835 = vmatpush1.msra.mxu0 0.0
    %836 = vmatprep.subr.mxu0 0.0
    %837 = vmatpush1.msra.mxu0 0.0
    %838 = vmatprep.subr.mxu0 0.0
    %839 = vmatpush1.msra.mxu0 0.0
    %840 = vmatprep.mubr.f32.mxu0 0.0
    %841 = vmatmul.mubr.f32.gmra.mrb[0].mxu0 %v774
    %v842 = vpop.f32.mrb[0].mxu0
    %v843 = vadd.f32 0.0, %v842
    %v844 = vpop.f32.mrb[0].mxu0
    %845 = vdwg.mxu0
    %v846 = vxor.u32 %v843, 2147483648
    %v847 = vmul.f32 %v846, 1.442695
    %v848 = vpow.pop %v847
    %v849 = vadd.f32 %v848, 1.0
    %v850 = vrcp.pop %v849
    %v851 = vmul.f32 1.0, %v850
    %s852 = scalar_lea.vmem [#allocation8], 1
    %853 = vst [vmem:[%s852] sm:$0x1] %v851
    // Predicated region
    $region26: #{tpu_custom_call.1} parent=1 // pred_check
      _
    $region27: #{tpu_custom_call.1} parent=1 // pred_check_branch
      %855 = sbr.rel (0) target = $region29
    $region28: #{tpu_custom_call.1} parent=1 // pred_region
      %s857 = ssub.s32 32, 32
      %858 = vsyncadd [#allocation4], %s857
      %s859 = sshll.u32 [#allocation8], 4
      %s860 = int_to_ptr.vmem [resolvable:$true] %s859
      %865 = dma.vmem_to_hbm [thread:$0]  %s860, 32, %s3, [#allocation4], 16, 16, 1
    $region29: #{tpu_custom_call.1} parent=1 // pred_fallthru
      _
    // Predicated region
    $region30: #{tpu_custom_call.1} parent=1 // pred_check
      _
    $region31: #{tpu_custom_call.1} parent=1 // pred_check_branch
      %867 = sbr.rel (0) target = $region33
    $region32: #{tpu_custom_call.1} parent=1 // pred_region
      %868 = dma.done [#allocation4], 32
    $region33: #{tpu_custom_call.1} parent=1 // pred_fallthru
      _
    %869 = vsyncpa [#allocation3], 1
    %870 = vsyncpa [#allocation6], 1
    %871 = vsyncpa [#allocation4], 1

</llo_original>
